<compile_context>
chip_gen: v6e
topology: v6e:2x2x1
jax: 0.10.0
libtpu: 0.0.40
codegen_flags: <defaults>
</compile_context>

<pallas_src>
import jax
import jax.numpy as jnp
from jax.experimental import pallas as pl
from jax.experimental.pallas import tpu as pltpu

_LANE = 128       # lane width (last-dim tiling unit)
_ROW_ALIGN = 16   # row granularity: 16 keeps bf16 operand vregs fully packed


def _rnn_seq_kernel(xs_ref, h0_ref, w1x_ref, w1h_ref, b1_ref, w2_ref, b2_ref,
                    out_ref, hT_ref, h_carry):
    """One (batch_block, time_step) grid point of the fused recurrence.

    xs_ref : (1, Bb, I)  f32     h0_ref : (Bb, H)  f32
    w1x_ref: (I, H)  bf16        w1h_ref: (H, H)  bf16     b1_ref: (1, H)  f32
    w2_ref : (H, Op) bf16 (zero-padded cols beyond O)       b2_ref: (1, Op) f32
    out_ref: (1, Bb, Op) f32     hT_ref : (Bb, H) f32
    h_carry: (Bb, H)  f32 VMEM scratch -- hidden state carried across time.
    """
    t = pl.program_id(1)

    @pl.when(t == 0)
    def _():
        h_carry[...] = h0_ref[...]

    mm_dtype = w1x_ref.dtype
    x_bf = xs_ref[0].astype(mm_dtype)          # in-kernel cast (hides under MXU)
    h_bf = h_carry[...].astype(mm_dtype)

    z1 = (jnp.dot(x_bf, w1x_ref[...], preferred_element_type=jnp.float32)
          + jnp.dot(h_bf, w1h_ref[...], preferred_element_type=jnp.float32)
          + b1_ref[...])
    hidden = jax.nn.sigmoid(z1)                # f32 elementwise (v5e-safe)

    z2 = jnp.dot(hidden.astype(mm_dtype), w2_ref[...],
                 preferred_element_type=jnp.float32) + b2_ref[...]
    out_ref[0] = jax.nn.sigmoid(z2)

    h_carry[...] = hidden                      # f32 carry: no bf16 drift over T

    @pl.when(t == pl.num_programs(1) - 1)
    def _():
        hT_ref[...] = hidden


def prepare_params(w1, b1, w2, b2, input_size, *, matmul_dtype=jnp.bfloat16):
    """One-time re-layout of the PyTorch-Linear parameters (off the hot path).

    w1: (H, I+H)   b1: (H,)   w2: (O, H)   b2: (O,)
    """
    hidden_size = w1.shape[0]
    output_size = w2.shape[0]
    out_pad = pl.cdiv(output_size, _LANE) * _LANE          # lane-dense output

    w1x = jnp.transpose(w1[:, :input_size]).astype(matmul_dtype)    # (I, H)
    w1h = jnp.transpose(w1[:, input_size:]).astype(matmul_dtype)    # (H, H)
    b1r = b1.astype(jnp.float32).reshape(1, hidden_size)            # (1, H)

    w2t = jnp.transpose(w2).astype(matmul_dtype)                    # (H, O)
    w2p = jnp.pad(w2t, ((0, 0), (0, out_pad - output_size)))        # (H, Op)
    b2p = jnp.pad(b2.astype(jnp.float32),
                  (0, out_pad - output_size)).reshape(1, out_pad)   # (1, Op)

    return {"w1x": w1x, "w1h": w1h, "b1": b1r, "w2": w2p, "b2": b2p,
            "output_size": output_size}


def ex_rnn_forward_seq(xs, h0, params, *, batch_block=128):
    """Fused T-step recurrence in a single pallas_call.

    xs : (T, B, I) f32    h0 : (B, H) f32
    Returns (outputs (T, B, O) f32, h_final (B, H) f32), where h_final is the
    hidden computed at the last step (the natural recurrent use of the cell);
    the literal single-step module semantics are provided by ex_rnn_forward.
    """
    T, B, I = xs.shape
    H = h0.shape[1]
    Op = params["w2"].shape[1]
    O = params["output_size"]

    bb = min(batch_block, pl.cdiv(B, _ROW_ALIGN) * _ROW_ALIGN)
    Bp = pl.cdiv(B, bb) * bb
    nb = Bp // bb
    if Bp != B:                                # pad only the tail, only if needed
        xs = jnp.pad(xs, ((0, 0), (0, Bp - B), (0, 0)))
        h0_p = jnp.pad(h0, ((0, Bp - B), (0, 0)))
    else:
        h0_p = h0

    const = lambda shape: pl.BlockSpec(shape, lambda i, t: (0, 0))

    outs, h_final = pl.pallas_call(
        _rnn_seq_kernel,
        out_shape=(jax.ShapeDtypeStruct((T, Bp, Op), jnp.float32),
                   jax.ShapeDtypeStruct((Bp, H), jnp.float32)),
        grid=(nb, T),
        in_specs=[
            pl.BlockSpec((1, bb, I), lambda i, t: (t, i, 0)),   # x_t per step
            pl.BlockSpec((bb, H), lambda i, t: (i, 0)),         # h0
            const(params["w1x"].shape),                          # VMEM-resident
            const(params["w1h"].shape),
            const(params["b1"].shape),
            const(params["w2"].shape),
            const(params["b2"].shape),
        ],
        out_specs=(
            pl.BlockSpec((1, bb, Op), lambda i, t: (t, i, 0)),   # per-step output
            pl.BlockSpec((bb, H), lambda i, t: (i, 0)),          # final hidden
        ),
        scratch_shapes=[pltpu.VMEM((bb, H), jnp.float32)],
        compiler_params=pltpu.CompilerParams(
            dimension_semantics=("parallel", "arbitrary")),  # batch ||, time seq
    )(xs, h0_p, params["w1x"], params["w1h"], params["b1"],
      params["w2"], params["b2"])

    return outs[:, :B, :O], h_final[:B]


def ex_rnn_forward(x, hidden_state, params, *, batch_block=128):
    """Single step with the exact module semantics.

    Returns (output, hidden_state) where hidden_state is the caller's ORIGINAL
    hidden state, untouched (matching the PyTorch module's return).
    """
    outs, _ = ex_rnn_forward_seq(x[None], hidden_state, params,
                                 batch_block=batch_block)
    return outs[0], hidden_state


if __name__ == "__main__":
    input_size = 32
    hidden_size = 128
    output_size = 2
    batch = 2
    seq_len = 8

    key = jax.random.PRNGKey(0)
    k_x, k_xs, k_w1, k_b1, k_w2, k_b2 = jax.random.split(key, 6)

    x = jax.random.normal(k_x, (batch, input_size), dtype=jnp.float32)
    xs = jax.random.normal(k_xs, (seq_len, batch, input_size), dtype=jnp.float32)
    hidden_state = jnp.zeros((batch, hidden_size), dtype=jnp.float32)  # init_hidden

    # Deterministic parameter init (mimics nn.Linear uniform bound 1/sqrt(fan_in)).
    fan1 = input_size + hidden_size
    w1 = jax.random.uniform(k_w1, (hidden_size, fan1), jnp.float32,
                            minval=-1.0 / jnp.sqrt(fan1), maxval=1.0 / jnp.sqrt(fan1))
    b1 = jax.random.uniform(k_b1, (hidden_size,), jnp.float32,
                            minval=-1.0 / jnp.sqrt(fan1), maxval=1.0 / jnp.sqrt(fan1))
    fan2 = hidden_size
    w2 = jax.random.uniform(k_w2, (output_size, fan2), jnp.float32,
                            minval=-1.0 / jnp.sqrt(fan2), maxval=1.0 / jnp.sqrt(fan2))
    b2 = jax.random.uniform(k_b2, (output_size,), jnp.float32,
                            minval=-1.0 / jnp.sqrt(fan2), maxval=1.0 / jnp.sqrt(fan2))

    params = prepare_params(w1, b1, w2, b2, input_size)   # one-time re-layout

    # ---- single step (exact module semantics) -------------------------------
    output, h_out = ex_rnn_forward(x, hidden_state, params)

    # ---- fused T-step recurrence (one pallas_call for the whole sequence) ---
    outs_seq, h_final = ex_rnn_forward_seq(xs, hidden_state, params)
    jax.block_until_ready((output, h_out, outs_seq, h_final))

    w1_bf = w1.astype(jnp.bfloat16)
    w2_bf = w2.astype(jnp.bfloat16)

    # Reference 1 (single step): same bf16 matmul-operand precision as the kernel.
    xh_bf = jnp.concatenate([x, hidden_state], axis=1).astype(jnp.bfloat16)
    hid_bf = jax.nn.sigmoid(
        jnp.dot(xh_bf, w1_bf.T, preferred_element_type=jnp.float32) + b1)
    out_bf = jax.nn.sigmoid(
        jnp.dot(hid_bf.astype(jnp.bfloat16), w2_bf.T,
                preferred_element_type=jnp.float32) + b2)

    # Reference 2 (single step): full-f32 math to bound bf16 quantization error.
    hid_f32 = jax.nn.sigmoid(jnp.concatenate([x, hidden_state], axis=1) @ w1.T + b1)
    out_f32 = jax.nn.sigmoid(hid_f32 @ w2.T + b2)

    assert output.shape == (batch, output_size)
    assert h_out.shape == (batch, hidden_size)
    assert jnp.array_equal(h_out, hidden_state)          # returns ORIGINAL hidden
    assert jnp.allclose(output, out_bf, atol=2e-3, rtol=2e-3), \
        f"single-step vs bf16 ref: max |diff| = {jnp.max(jnp.abs(output - out_bf))}"
    assert jnp.allclose(output, out_f32, atol=2e-2, rtol=2e-2), \
        f"single-step vs f32 ref: max |diff| = {jnp.max(jnp.abs(output - out_f32))}"

    # Reference loop for the fused recurrence: hidden carried in f32, cast to
    # bf16 only at matmul operands (exactly what the kernel does).
    h = hidden_state
    ref_outs = []
    for t in range(seq_len):
        xh = jnp.concatenate([xs[t], h], axis=1).astype(jnp.bfloat16)
        h = jax.nn.sigmoid(
            jnp.dot(xh, w1_bf.T, preferred_element_type=jnp.float32) + b1)
        ref_outs.append(jax.nn.sigmoid(
            jnp.dot(h.astype(jnp.bfloat16), w2_bf.T,
                    preferred_element_type=jnp.float32) + b2))
    ref_outs = jnp.stack(ref_outs)

    assert outs_seq.shape == (seq_len, batch, output_size)
    assert h_final.shape == (batch, hidden_size)
    assert jnp.allclose(outs_seq, ref_outs, atol=5e-3, rtol=5e-3), \
        f"fused seq vs ref loop: max |diff| = {jnp.max(jnp.abs(outs_seq - ref_outs))}"
    assert jnp.allclose(h_final, h, atol=5e-3, rtol=5e-3), \
        f"fused final h vs ref loop: max |diff| = {jnp.max(jnp.abs(h_final - h))}"

    print("KERNEL_OK")
</pallas_src>

<mosaic_0001>
module attributes {stable_mosaic.version = 11 : i64} {
  func.func @_rnn_seq_kernel(%arg0: i32, %arg1: i32, %arg2: memref<1x16x32xf32, #tpu.memory_space<vmem>>, %arg3: memref<16x128xf32, #tpu.memory_space<vmem>>, %arg4: memref<32x128xbf16, #tpu.memory_space<vmem>>, %arg5: memref<128x128xbf16, #tpu.memory_space<vmem>>, %arg6: memref<1x128xf32, #tpu.memory_space<vmem>>, %arg7: memref<128x128xbf16, #tpu.memory_space<vmem>>, %arg8: memref<1x128xf32, #tpu.memory_space<vmem>>, %arg9: memref<1x16x128xf32, #tpu.memory_space<vmem>>, %arg10: memref<16x128xf32, #tpu.memory_space<vmem>>, %arg11: memref<16x128xf32, #tpu.memory_space<vmem>>) attributes {dimension_semantics = [#tpu.dimension_semantics<parallel>, #tpu.dimension_semantics<arbitrary>], iteration_bounds = array<i64: 1, 1>, scalar_prefetch = 0 : i64, scratch_operands = 1 : i64, tpu.core_type = #tpu.core_type<tc>, window_params = [{transform_indices = @transform_0, window_bounds = array<i64: 1, 16, 32>}, {transform_indices = @transform_1, window_bounds = array<i64: 16, 128>}, {pipeline_mode = #tpu.pipeline_mode<synchronous>, transform_indices = @transform_2, window_bounds = array<i64: 32, 128>}, {pipeline_mode = #tpu.pipeline_mode<synchronous>, transform_indices = @transform_3, window_bounds = array<i64: 128, 128>}, {pipeline_mode = #tpu.pipeline_mode<synchronous>, transform_indices = @transform_4, window_bounds = array<i64: 1, 128>}, {pipeline_mode = #tpu.pipeline_mode<synchronous>, transform_indices = @transform_5, window_bounds = array<i64: 128, 128>}, {pipeline_mode = #tpu.pipeline_mode<synchronous>, transform_indices = @transform_6, window_bounds = array<i64: 1, 128>}, {transform_indices = @transform_7, window_bounds = array<i64: 1, 16, 128>}, {transform_indices = @transform_8, window_bounds = array<i64: 16, 128>}]} {
    %c0_i32 = arith.constant 0 : i32
    %0 = arith.cmpi eq, %arg1, %c0_i32 : i32
    %1 = arith.extui %0 : i1 to i32
    %c0_i32_0 = arith.constant 0 : i32
    %2 = arith.cmpi ne, %1, %c0_i32_0 : i32
    scf.if %2 {
      %c0_26 = arith.constant 0 : index
      %c0_27 = arith.constant 0 : index
      %39 = vector.load %arg3[%c0_26, %c0_27] : memref<16x128xf32, #tpu.memory_space<vmem>>, vector<16x128xf32>
      %c0_28 = arith.constant 0 : index
      %c0_29 = arith.constant 0 : index
      %40 = vector.load %arg11[%c0_28, %c0_29] : memref<16x128xf32, #tpu.memory_space<vmem>>, vector<16x128xf32>
      tpu.vector_store %arg11[%c0_28, %c0_29], %39 {strides = array<i32>} : memref<16x128xf32, #tpu.memory_space<vmem>>, vector<16x128xf32>,
    } else {
    }
    %c0 = arith.constant 0 : index
    %c0_1 = arith.constant 0 : index
    %c0_2 = arith.constant 0 : index
    %3 = vector.load %arg2[%c0, %c0_1, %c0_2] : memref<1x16x32xf32, #tpu.memory_space<vmem>>, vector<1x16x32xf32>
    %4 = vector.shape_cast %3 : vector<1x16x32xf32> to vector<16x32xf32>
    %5 = arith.truncf %4 : vector<16x32xf32> to vector<16x32xbf16>
    %c0_3 = arith.constant 0 : index
    %c0_4 = arith.constant 0 : index
    %6 = vector.load %arg11[%c0_3, %c0_4] : memref<16x128xf32, #tpu.memory_space<vmem>>, vector<16x128xf32>
    %7 = arith.truncf %6 : vector<16x128xf32> to vector<16x128xbf16>
    %c0_5 = arith.constant 0 : index
    %c0_6 = arith.constant 0 : index
    %8 = vector.load %arg4[%c0_5, %c0_6] : memref<32x128xbf16, #tpu.memory_space<vmem>>, vector<32x128xbf16>
    %cst = arith.constant dense<0.000000e+00> : vector<16x128xf32>
    %9 = tpu.matmul %5, %8, %cst {dimension_numbers = #tpu.dot_dimension_numbers<[1], [0], [0], [1], [0, 0, 1, 1], [], []>} : vector<16x32xbf16>, vector<32x128xbf16>, vector<16x128xf32> -> vector<16x128xf32>
    %c0_7 = arith.constant 0 : index
    %c0_8 = arith.constant 0 : index
    %10 = vector.load %arg5[%c0_7, %c0_8] : memref<128x128xbf16, #tpu.memory_space<vmem>>, vector<128x128xbf16>
    %cst_9 = arith.constant dense<0.000000e+00> : vector<16x128xf32>
    %11 = tpu.matmul %7, %10, %cst_9 {dimension_numbers = #tpu.dot_dimension_numbers<[1], [0], [0], [1], [0, 0, 1, 1], [], []>} : vector<16x128xbf16>, vector<128x128xbf16>, vector<16x128xf32> -> vector<16x128xf32>
    %12 = arith.addf %9, %11 : vector<16x128xf32>
    %c0_10 = arith.constant 0 : index
    %c0_11 = arith.constant 0 : index
    %13 = vector.load %arg6[%c0_10, %c0_11] : memref<1x128xf32, #tpu.memory_space<vmem>>, vector<1x128xf32>
    %14 = vector.broadcast %13 : vector<1x128xf32> to vector<16x128xf32>
    %15 = arith.addf %12, %14 : vector<16x128xf32>
    %16 = arith.negf %15 : vector<16x128xf32>
    %17 = math.exp %16 : vector<16x128xf32>
    %cst_12 = arith.constant 1.000000e+00 : f32
    %18 = vector.broadcast %cst_12 : f32 to vector<16x128xf32>
    %19 = arith.addf %18, %17 : vector<16x128xf32>
    %20 = arith.divf %18, %19 : vector<16x128xf32>
    %21 = arith.truncf %20 : vector<16x128xf32> to vector<16x128xbf16>
    %c0_13 = arith.constant 0 : index
    %c0_14 = arith.constant 0 : index
    %22 = vector.load %arg7[%c0_13, %c0_14] : memref<128x128xbf16, #tpu.memory_space<vmem>>, vector<128x128xbf16>
    %cst_15 = arith.constant dense<0.000000e+00> : vector<16x128xf32>
    %23 = tpu.matmul %21, %22, %cst_15 {dimension_numbers = #tpu.dot_dimension_numbers<[1], [0], [0], [1], [0, 0, 1, 1], [], []>} : vector<16x128xbf16>, vector<128x128xbf16>, vector<16x128xf32> -> vector<16x128xf32>
    %c0_16 = arith.constant 0 : index
    %c0_17 = arith.constant 0 : index
    %24 = vector.load %arg8[%c0_16, %c0_17] : memref<1x128xf32, #tpu.memory_space<vmem>>, vector<1x128xf32>
    %25 = vector.broadcast %24 : vector<1x128xf32> to vector<16x128xf32>
    %26 = arith.addf %23, %25 : vector<16x128xf32>
    %27 = arith.negf %26 : vector<16x128xf32>
    %28 = math.exp %27 : vector<16x128xf32>
    %cst_18 = arith.constant 1.000000e+00 : f32
    %29 = vector.broadcast %cst_18 : f32 to vector<16x128xf32>
    %30 = arith.addf %29, %28 : vector<16x128xf32>
    %31 = arith.divf %29, %30 : vector<16x128xf32>
    %c0_19 = arith.constant 0 : index
    %c0_20 = arith.constant 0 : index
    %c0_21 = arith.constant 0 : index
    %32 = vector.load %arg9[%c0_19, %c0_20, %c0_21] : memref<1x16x128xf32, #tpu.memory_space<vmem>>, vector<1x16x128xf32>
    %33 = vector.shape_cast %32 : vector<1x16x128xf32> to vector<16x128xf32>
    %34 = vector.shape_cast %31 : vector<16x128xf32> to vector<1x16x128xf32>
    tpu.vector_store %arg9[%c0_19, %c0_20, %c0_21], %34 {strides = array<i32>} : memref<1x16x128xf32, #tpu.memory_space<vmem>>, vector<1x16x128xf32>,
    %c0_22 = arith.constant 0 : index
    %c0_23 = arith.constant 0 : index
    %35 = vector.load %arg11[%c0_22, %c0_23] : memref<16x128xf32, #tpu.memory_space<vmem>>, vector<16x128xf32>
    tpu.vector_store %arg11[%c0_22, %c0_23], %20 {strides = array<i32>} : memref<16x128xf32, #tpu.memory_space<vmem>>, vector<16x128xf32>,
    %c0_i32_24 = arith.constant 0 : i32
    %36 = arith.cmpi eq, %arg1, %c0_i32_24 : i32
    %37 = arith.extui %36 : i1 to i32
    %c0_i32_25 = arith.constant 0 : i32
    %38 = arith.cmpi ne, %37, %c0_i32_25 : i32
    scf.if %38 {
      %c0_26 = arith.constant 0 : index
      %c0_27 = arith.constant 0 : index
      %39 = vector.load %arg10[%c0_26, %c0_27] : memref<16x128xf32, #tpu.memory_space<vmem>>, vector<16x128xf32>
      tpu.vector_store %arg10[%c0_26, %c0_27], %20 {strides = array<i32>} : memref<16x128xf32, #tpu.memory_space<vmem>>, vector<16x128xf32>,
    } else {
    }
    return
  }
  func.func @transform_0(%arg0: i32, %arg1: i32) -> (i32, i32, i32) {
    %c0_i32 = arith.constant 0 : i32
    %c0_i32_0 = arith.constant 0 : i32
    return %arg1, %arg0, %c0_i32 : i32, i32, i32
  }
  func.func @transform_1(%arg0: i32, %arg1: i32) -> (i32, i32) {
    %c0_i32 = arith.constant 0 : i32
    %c0_i32_0 = arith.constant 0 : i32
    return %arg0, %c0_i32 : i32, i32
  }
  func.func @transform_2(%arg0: i32, %arg1: i32) -> (i32, i32) {
    %c0_i32 = arith.constant 0 : i32
    %c0_i32_0 = arith.constant 0 : i32
    %c0_i32_1 = arith.constant 0 : i32
    return %c0_i32, %c0_i32_0 : i32, i32
  }
  func.func @transform_3(%arg0: i32, %arg1: i32) -> (i32, i32) {
    %c0_i32 = arith.constant 0 : i32
    %c0_i32_0 = arith.constant 0 : i32
    %c0_i32_1 = arith.constant 0 : i32
    return %c0_i32, %c0_i32_0 : i32, i32
  }
  func.func @transform_4(%arg0: i32, %arg1: i32) -> (i32, i32) {
    %c0_i32 = arith.constant 0 : i32
    %c0_i32_0 = arith.constant 0 : i32
    %c0_i32_1 = arith.constant 0 : i32
    return %c0_i32, %c0_i32_0 : i32, i32
  }
  func.func @transform_5(%arg0: i32, %arg1: i32) -> (i32, i32) {
    %c0_i32 = arith.constant 0 : i32
    %c0_i32_0 = arith.constant 0 : i32
    %c0_i32_1 = arith.constant 0 : i32
    return %c0_i32, %c0_i32_0 : i32, i32
  }
  func.func @transform_6(%arg0: i32, %arg1: i32) -> (i32, i32) {
    %c0_i32 = arith.constant 0 : i32
    %c0_i32_0 = arith.constant 0 : i32
    %c0_i32_1 = arith.constant 0 : i32
    return %c0_i32, %c0_i32_0 : i32, i32
  }
  func.func @transform_7(%arg0: i32, %arg1: i32) -> (i32, i32, i32) {
    %c0_i32 = arith.constant 0 : i32
    %c0_i32_0 = arith.constant 0 : i32
    return %arg1, %arg0, %c0_i32 : i32, i32, i32
  }
  func.func @transform_8(%arg0: i32, %arg1: i32) -> (i32, i32) {
    %c0_i32 = arith.constant 0 : i32
    %c0_i32_0 = arith.constant 0 : i32
    return %arg0, %c0_i32 : i32, i32
  }
}

</mosaic_0001>

<llo_original>
// kernel: tpu_custom_call.1
$region0: #{tpu_custom_call.1}
  #allocation0 [shape = 'u32[]', space=smem, size = 0x4, offset = 0x4, fixed_abs, tag = 'smem constant byte address 0x4 - core index']
  #allocation1 [shape = 'u32[144,128]{1,0:T(1,128)}', space=vmem, size = 0x12000, scoped, tag = 'internal scratch']
  #allocation2 [shape = 'f32[16,128]{1,0:T(8,128)}', space=vmem, size = 0x2000, scoped, tag = 'scratch operand']
  %s0 = inlined_call_operand.hbm [shape: f32[1,16,32], index: 0, kind: input, shape index: {}]
  %s1 = inlined_call_operand.hbm [shape: f32[16,128], index: 1, kind: input, shape index: {}]
  %s2 = inlined_call_operand.hbm [shape: bf16[32,128], index: 2, kind: input, shape index: {}]
  %s3 = inlined_call_operand.hbm [shape: bf16[128,128], index: 3, kind: input, shape index: {}]
  %s4 = inlined_call_operand.vmem [shape: f32[1,128], index: 4, kind: input, shape index: {}]
  %s5 = inlined_call_operand.hbm [shape: bf16[128,128], index: 5, kind: input, shape index: {}]
  %s6 = inlined_call_operand.vmem [shape: f32[1,128], index: 6, kind: input, shape index: {}]
  %s7 = inlined_call_operand.hbm [shape: f32[1,16,128], index: 7, kind: output, shape index: {0}]
  %s8 = inlined_call_operand.hbm [shape: f32[16,128], index: 8, kind: output, shape index: {1}]
  %9 = xla_tuple %s7, %s8
  %s10 = sld [smem:[#allocation0]]
  $region74: #{tpu_custom_call.1} parent=0
    _
  %s12 = ssub.s32 1, %s10
  %s13 = scalar_select 0, %s12, %s10
  $region1: #{tpu_custom_call.1} parent=0
    #allocation3 [shape = 'u8[8192]{0}', space=vmem, size = 0x2000, scoped, tag = 'input window, operand 0, single buffered']
    #allocation4 [shape = 's32[1]{0}', space=sflag, size = 0x4, scoped, tag = 'scoped memory for tpu_custom_call.1']
    #allocation5 [shape = 's32[1]{0}', space=sflag, size = 0x4, scoped, tag = 'scoped memory for tpu_custom_call.1']
    #allocation6 [shape = 'u8[8192]{0}', space=vmem, size = 0x2000, scoped, tag = 'input window, operand 1, single buffered']
    #allocation7 [shape = 's32[1]{0}', space=sflag, size = 0x4, scoped, tag = 'scoped memory for tpu_custom_call.1']
    #allocation8 [shape = 'u8[8192]{0}', space=vmem, size = 0x2000, scoped, tag = 'input window, operand 2, single buffered']
    #allocation9 [shape = 'u8[32768]{0}', space=vmem, size = 0x8000, scoped, tag = 'input window, operand 3, single buffered']
    #allocation10 [shape = 's32[1]{0}', space=sflag, size = 0x4, scoped, tag = 'scoped memory for tpu_custom_call.1']
    #allocation11 [shape = 'u8[32768]{0}', space=vmem, size = 0x8000, scoped, tag = 'input window, operand 5, single buffered']
    #allocation12 [shape = 'u8[8192]{0}', space=vmem, size = 0x2000, scoped, tag = 'output window, operand 0, single buffered']
    #allocation13 [shape = 'u8[8192]{0}', space=vmem, size = 0x2000, scoped, tag = 'output window, operand 1, single buffered']
    #allocation14 [shape = 's32[1]{0}', space=sflag, size = 0x4, scoped, tag = 'scoped memory for tpu_custom_call.1']
    %14 = vsyncpa [#allocation4], 0
    %15 = vsyncpa [#allocation7], 0
    %16 = vsyncpa [#allocation10], 0
    %17 = vsyncpa [#allocation5], 0
    %18 = vsyncpa [#allocation14], 0
    // Predicated region
    $region2: #{tpu_custom_call.1} parent=1 // pred_check
      _
    $region3: #{tpu_custom_call.1} parent=1 // pred_check_branch
      %20 = sbr.rel (0) target = $region5
    $region4: #{tpu_custom_call.1} parent=1 // pred_region
      %s22 = ssub.s32 256, 256
      %23 = vsyncadd [#allocation4], %s22
      %s24 = sshll.u32 [#allocation3], 4
      %s25 = int_to_ptr.vmem [resolvable:$true] %s24
      %30 = dma.hbm_to_vmem [thread:$0]  %s0, 256, %s25, [#allocation4], 128, 128, 8
    $region5: #{tpu_custom_call.1} parent=1 // pred_fallthru
      _
    // Predicated region
    $region6: #{tpu_custom_call.1} parent=1 // pred_check
      _
    $region7: #{tpu_custom_call.1} parent=1 // pred_check_branch
      %32 = sbr.rel (0) target = $region9
    $region8: #{tpu_custom_call.1} parent=1 // pred_region
      %s34 = ssub.s32 256, 256
      %35 = vsyncadd [#allocation7], %s34
      %s36 = sshll.u32 [#allocation6], 4
      %s37 = int_to_ptr.vmem [resolvable:$true] %s36
      %42 = dma.hbm_to_vmem [thread:$0]  %s1, 256, %s37, [#allocation7], 128, 128, 8
    $region9: #{tpu_custom_call.1} parent=1 // pred_fallthru
      _
    // Predicated region
    $region10: #{tpu_custom_call.1} parent=1 // pred_check
      _
    $region11: #{tpu_custom_call.1} parent=1 // pred_check_branch
      %44 = sbr.rel (0) target = $region13
    $region12: #{tpu_custom_call.1} parent=1 // pred_region
      %s46 = ssub.s32 256, 256
      %47 = vsyncadd [#allocation7], %s46
      %s48 = sshll.u32 [#allocation8], 4
      %s49 = int_to_ptr.vmem [resolvable:$true] %s48
      %54 = dma.hbm_to_vmem [thread:$0]  %s2, 256, %s49, [#allocation7], 64, 64, 4
    $region13: #{tpu_custom_call.1} parent=1 // pred_fallthru
      _
    // Predicated region
    $region14: #{tpu_custom_call.1} parent=1 // pred_check
      _
    $region15: #{tpu_custom_call.1} parent=1 // pred_check_branch
      %56 = sbr.rel (0) target = $region17
    $region16: #{tpu_custom_call.1} parent=1 // pred_region
      %s58 = ssub.s32 1024, 1024
      %59 = vsyncadd [#allocation10], %s58
      %s60 = sshll.u32 [#allocation9], 4
      %s61 = int_to_ptr.vmem [resolvable:$true] %s60
      %66 = dma.hbm_to_vmem [thread:$0]  %s3, 1024, %s61, [#allocation10], 64, 64, 4
    $region17: #{tpu_custom_call.1} parent=1 // pred_fallthru
      _
    // Predicated region
    $region18: #{tpu_custom_call.1} parent=1 // pred_check
      _
    $region19: #{tpu_custom_call.1} parent=1 // pred_check_branch
      %68 = sbr.rel (0) target = $region21
    $region20: #{tpu_custom_call.1} parent=1 // pred_region
      _
    $region21: #{tpu_custom_call.1} parent=1 // pred_fallthru
      _
    // Predicated region
    $region22: #{tpu_custom_call.1} parent=1 // pred_check
      _
    $region23: #{tpu_custom_call.1} parent=1 // pred_check_branch
      %70 = sbr.rel (0) target = $region25
    $region24: #{tpu_custom_call.1} parent=1 // pred_region
      %s72 = ssub.s32 1024, 1024
      %73 = vsyncadd [#allocation10], %s72
      %s74 = sshll.u32 [#allocation11], 4
      %s75 = int_to_ptr.vmem [resolvable:$true] %s74
      %80 = dma.hbm_to_vmem [thread:$0]  %s5, 1024, %s75, [#allocation10], 64, 64, 4
    $region25: #{tpu_custom_call.1} parent=1 // pred_fallthru
      _
    // Predicated region
    $region26: #{tpu_custom_call.1} parent=1 // pred_check
      _
    $region27: #{tpu_custom_call.1} parent=1 // pred_check_branch
      %82 = sbr.rel (0) target = $region29
    $region28: #{tpu_custom_call.1} parent=1 // pred_region
      _
    $region29: #{tpu_custom_call.1} parent=1 // pred_fallthru
      _
    // Predicated region
    $region30: #{tpu_custom_call.1} parent=1 // pred_check
      _
    $region31: #{tpu_custom_call.1} parent=1 // pred_check_branch
      %84 = sbr.rel (0) target = $region33
    $region32: #{tpu_custom_call.1} parent=1 // pred_region
      %85 = dma.done [#allocation4], 256
    $region33: #{tpu_custom_call.1} parent=1 // pred_fallthru
      _
    // Predicated region
    $region34: #{tpu_custom_call.1} parent=1 // pred_check
      _
    $region35: #{tpu_custom_call.1} parent=1 // pred_check_branch
      %87 = sbr.rel (0) target = $region37
    $region36: #{tpu_custom_call.1} parent=1 // pred_region
      %88 = dma.done [#allocation7], 256
    $region37: #{tpu_custom_call.1} parent=1 // pred_fallthru
      _
    // Predicated region
    $region38: #{tpu_custom_call.1} parent=1 // pred_check
      _
    $region39: #{tpu_custom_call.1} parent=1 // pred_check_branch
      %90 = sbr.rel (0) target = $region41
    $region40: #{tpu_custom_call.1} parent=1 // pred_region
      %91 = dma.done [#allocation7], 256
    $region41: #{tpu_custom_call.1} parent=1 // pred_fallthru
      _
    // Predicated region
    $region42: #{tpu_custom_call.1} parent=1 // pred_check
      _
    $region43: #{tpu_custom_call.1} parent=1 // pred_check_branch
      %93 = sbr.rel (0) target = $region45
    $region44: #{tpu_custom_call.1} parent=1 // pred_region
      %94 = dma.done [#allocation10], 1024
    $region45: #{tpu_custom_call.1} parent=1 // pred_fallthru
      _
    // Predicated region
    $region46: #{tpu_custom_call.1} parent=1 // pred_check
      _
    $region47: #{tpu_custom_call.1} parent=1 // pred_check_branch
      %96 = sbr.rel (0) target = $region49
    $region48: #{tpu_custom_call.1} parent=1 // pred_region
      %97 = dma.done [#allocation10], 1024
    $region49: #{tpu_custom_call.1} parent=1 // pred_fallthru
      _
    %p99 = scmp.eq.s32.totalorder 0, 0
    // Predicated region
    $region50: #{tpu_custom_call.1} parent=1 // pred_check
      %p100 = pneg %p99
    $region51: #{tpu_custom_call.1} parent=1 // pred_check_branch
      %102 = sbr.rel (%p100) target = $region53
    $region52: #{tpu_custom_call.1} parent=1 // pred_region
      %v103 = vld [vmem:[#allocation6] sm:$0xff]
      %v104 = vld [vmem:[#allocation6 + $0x8] sm:$0xff]
      %105 = vst [vmem:[#allocation2] sm:$0xff] %v103
      %106 = vst [vmem:[#allocation2 + $0x8] sm:$0xff] %v104
    $region53: #{tpu_custom_call.1} parent=1 // pred_fallthru
      _
    %v107 = vld [vmem:[#allocation3] sm:$0xff]
    %v108 = vld [vmem:[#allocation3 + $0x8] sm:$0xff]
    %v109 = vpack.c.bf16 %v108, %v107
    %v110 = vld [vmem:[#allocation2] sm:$0xff]
    %v111 = vld [vmem:[#allocation2 + $0x8] sm:$0xff]
    %v112 = vpack.c.bf16 %v111, %v110
    %v113 = vld [vmem:[#allocation8] sm:$0xf]
    %v114 = vld [vmem:[#allocation8 + $0x4] sm:$0xf]
    %v115 = vld [vmem:[#allocation8 + $0x8] sm:$0xf]
    %v116 = vld [vmem:[#allocation8 + $0xc] sm:$0xf]
    %v117 = vld [vmem:[#allocation9] sm:$0xf]
    %v118 = vld [vmem:[#allocation9 + $0x4] sm:$0xf]
    %v119 = vld [vmem:[#allocation9 + $0x8] sm:$0xf]
    %v120 = vld [vmem:[#allocation9 + $0xc] sm:$0xf]
    %v121 = vld [vmem:[#allocation9 + $0x10] sm:$0xf]
    %v122 = vld [vmem:[#allocation9 + $0x14] sm:$0xf]
    %v123 = vld [vmem:[#allocation9 + $0x18] sm:$0xf]
    %v124 = vld [vmem:[#allocation9 + $0x1c] sm:$0xf]
    %v125 = vld [vmem:[#allocation9 + $0x20] sm:$0xf]
    %v126 = vld [vmem:[#allocation9 + $0x24] sm:$0xf]
    %v127 = vld [vmem:[#allocation9 + $0x28] sm:$0xf]
    %v128 = vld [vmem:[#allocation9 + $0x2c] sm:$0xf]
    %v129 = vld [vmem:[#allocation9 + $0x30] sm:$0xf]
    %v130 = vld [vmem:[#allocation9 + $0x34] sm:$0xf]
    %v131 = vld [vmem:[#allocation9 + $0x38] sm:$0xf]
    %v132 = vld [vmem:[#allocation9 + $0x3c] sm:$0xf]
    %v149 = vunpack.c.l.b16 %v117
    %v150 = vunpack.c.l.b16 %v118
    %v151 = vunpack.c.l.b16 %v119
    %v152 = vunpack.c.l.b16 %v120
    %v153 = vunpack.c.l.b16 %v121
    %v154 = vunpack.c.l.b16 %v122
    %v155 = vunpack.c.l.b16 %v123
    %v156 = vunpack.c.l.b16 %v124
    %v157 = vunpack.c.l.b16 %v125
    %v158 = vunpack.c.l.b16 %v126
    %v159 = vunpack.c.l.b16 %v127
    %v160 = vunpack.c.l.b16 %v128
    %v161 = vunpack.c.l.b16 %v129
    %v162 = vunpack.c.l.b16 %v130
    %v163 = vunpack.c.l.b16 %v131
    %v164 = vunpack.c.l.b16 %v132
    %v165 = vpack.c.b16 %v150, %v149
    %v166 = vpack.c.b16 %v152, %v151
    %v167 = vpack.c.b16 %v154, %v153
    %v168 = vpack.c.b16 %v156, %v155
    %v169 = vpack.c.b16 %v158, %v157
    %v170 = vpack.c.b16 %v160, %v159
    %v171 = vpack.c.b16 %v162, %v161
    %v172 = vpack.c.b16 %v164, %v163
    %181 = vmatprep.subr.bf16.mxu0 0
    %182 = vmatpush1.bf16.msra.mxu0 %v172
    %183 = vmatprep.subr.bf16.mxu0 0
    %184 = vmatpush1.bf16.msra.mxu0 %v171
    %185 = vmatprep.subr.bf16.mxu0 0
    %186 = vmatpush1.bf16.msra.mxu0 %v170
    %187 = vmatprep.subr.bf16.mxu0 0
    %188 = vmatpush1.bf16.msra.mxu0 %v169
    %189 = vmatprep.subr.bf16.mxu0 0
    %190 = vmatpush1.bf16.msra.mxu0 %v168
    %191 = vmatprep.subr.bf16.mxu0 0
    %192 = vmatpush1.bf16.msra.mxu0 %v167
    %193 = vmatprep.subr.bf16.mxu0 0
    %194 = vmatpush1.bf16.msra.mxu0 %v166
    %195 = vmatprep.subr.bf16.mxu0 0
    %196 = vmatpush1.bf16.msra.mxu0 %v165
    %197 = vmatprep.subr.bf16.mxu0 0
    %198 = vmatpush2.bf16.msra.mxu0 0
    %199 = vmatprep.subr.bf16.mxu0 0
    %200 = vmatpush2.bf16.msra.mxu0 0
    %201 = vmatprep.subr.bf16.mxu0 0
    %202 = vmatpush2.bf16.msra.mxu0 0
    %203 = vmatprep.subr.bf16.mxu0 0
    %204 = vmatpush2.bf16.msra.mxu0 0
    %205 = vmatprep.subr.bf16.mxu0 0
    %206 = vmatpush2.bf16.msra.mxu0 0
    %207 = vmatprep.subr.bf16.mxu0 0
    %208 = vmatpush2.bf16.msra.mxu0 0
    %209 = vmatprep.subr.bf16.mxu0 0
    %210 = vmatpush2.bf16.msra.mxu0 0
    %211 = vmatprep.subr.bf16.mxu0 0
    %212 = vmatpush2.bf16.msra.mxu0 0
    %213 = vmatprep.mubr.bf16.mxu0 0
    %214 = vmatmul.mubr.bf16.gmra.mxu0 %v112
    %v215 = vpop.f32.mrf.mxu0
    %v216 = vadd.f32 0.0, %v215
    %v217 = vpop.f32.mrf.mxu0
    %v218 = vpop.f32.mrf.mxu0
    %v219 = vadd.f32 0.0, %v218
    %v220 = vpop.f32.mrf.mxu0
    %221 = vdwg.mxu0
    %v226 = vunpack.c.l.b16 %v113
    %v227 = vunpack.c.l.b16 %v114
    %v228 = vunpack.c.l.b16 %v115
    %v229 = vunpack.c.l.b16 %v116
    %v230 = vpack.c.b16 %v227, %v226
    %v231 = vpack.c.b16 %v229, %v228
    %vm234 = vcmask 261120
    %v236 = vsel %vm234, %v109, 0
    %238 = vmatprep.subr.bf16.mxu0 0
    %239 = vmatpush1.bf16.msra.mxu0 0
    %240 = vmatprep.subr.bf16.mxu0 0
    %241 = vmatpush1.bf16.msra.mxu0 0
    %242 = vmatprep.subr.bf16.mxu0 0
    %243 = vmatpush1.bf16.msra.mxu0 0
    %244 = vmatprep.subr.bf16.mxu0 0
    %245 = vmatpush1.bf16.msra.mxu0 0
    %246 = vmatprep.subr.bf16.mxu0 0
    %247 = vmatpush1.bf16.msra.mxu0 0
    %248 = vmatprep.subr.bf16.mxu0 0
    %249 = vmatpush1.bf16.msra.mxu0 0
    %250 = vmatprep.subr.bf16.mxu0 0
    %251 = vmatpush1.bf16.msra.mxu0 %v231
    %252 = vmatprep.subr.bf16.mxu0 0
    %253 = vmatpush1.bf16.msra.mxu0 %v230
    %254 = vmatprep.subr.bf16.mxu0 0
    %255 = vmatpush2.bf16.msra.mxu0 0
    %256 = vmatprep.subr.bf16.mxu0 0
    %257 = vmatpush2.bf16.msra.mxu0 0
    %258 = vmatprep.subr.bf16.mxu0 0
    %259 = vmatpush2.bf16.msra.mxu0 0
    %260 = vmatprep.subr.bf16.mxu0 0
    %261 = vmatpush2.bf16.msra.mxu0 0
    %262 = vmatprep.subr.bf16.mxu0 0
    %263 = vmatpush2.bf16.msra.mxu0 0
    %264 = vmatprep.subr.bf16.mxu0 0
    %265 = vmatpush2.bf16.msra.mxu0 0
    %266 = vmatprep.subr.bf16.mxu0 0
    %267 = vmatpush2.bf16.msra.mxu0 0
    %268 = vmatprep.subr.bf16.mxu0 0
    %269 = vmatpush2.bf16.msra.mxu0 0
    %270 = vmatprep.mubr.bf16.mxu0 0
    %271 = vmatmul.mubr.bf16.gmra.mxu0 %v236
    %v272 = vpop.f32.mrf.mxu0
    %v273 = vadd.f32 %v216, %v272
    %v274 = vpop.f32.mrf.mxu0
    %v275 = vpop.f32.mrf.mxu0
    %v276 = vadd.f32 %v219, %v275
    %v277 = vpop.f32.mrf.mxu0
    %278 = vdwg.mxu0
    %v279 = vld [vmem:[%s4] sm:$0x1]
    %v281 = vlaneseq
    %v282 = vshrl.u32 %v281, 7
    %v283 = vsub.s32 0, %v282
    %v284 = vrot.slane %v279, %v283
    %v286 = vadd.f32 %v273, %v284
    %v287 = vadd.f32 %v276, %v284
    %v288 = vxor.u32 %v286, 2147483648
    %v289 = vxor.u32 %v287, 2147483648
    %v290 = vmul.f32 %v288, 1.442695
    %v291 = vpow.pop %v290
    %v292 = vmul.f32 %v289, 1.442695
    %v293 = vpow.pop %v292
    %v294 = vadd.f32 %v291, 1.0
    %v295 = vadd.f32 %v293, 1.0
    %v296 = vrcp.pop %v294
    %v297 = vmul.f32 1.0, %v296
    %v298 = vrcp.pop %v295
    %v299 = vmul.f32 1.0, %v298
    %v300 = vpack.c.bf16 %v299, %v297
    %v301 = vld [vmem:[#allocation11] sm:$0xf]
    %v302 = vld [vmem:[#allocation11 + $0x4] sm:$0xf]
    %v303 = vld [vmem:[#allocation11 + $0x8] sm:$0xf]
    %v304 = vld [vmem:[#allocation11 + $0xc] sm:$0xf]
    %v305 = vld [vmem:[#allocation11 + $0x10] sm:$0xf]
    %v306 = vld [vmem:[#allocation11 + $0x14] sm:$0xf]
    %v307 = vld [vmem:[#allocation11 + $0x18] sm:$0xf]
    %v308 = vld [vmem:[#allocation11 + $0x1c] sm:$0xf]
    %v309 = vld [vmem:[#allocation11 + $0x20] sm:$0xf]
    %v310 = vld [vmem:[#allocation11 + $0x24] sm:$0xf]
    %v311 = vld [vmem:[#allocation11 + $0x28] sm:$0xf]
    %v312 = vld [vmem:[#allocation11 + $0x2c] sm:$0xf]
    %v313 = vld [vmem:[#allocation11 + $0x30] sm:$0xf]
    %v314 = vld [vmem:[#allocation11 + $0x34] sm:$0xf]
    %v315 = vld [vmem:[#allocation11 + $0x38] sm:$0xf]
    %v316 = vld [vmem:[#allocation11 + $0x3c] sm:$0xf]
    %v317 = vld [vmem:[%s6] sm:$0x1]
    %v319 = vlaneseq
    %v320 = vshrl.u32 %v319, 7
    %v321 = vsub.s32 0, %v320
    %v322 = vrot.slane %v317, %v321
    %v340 = vunpack.c.l.b16 %v301
    %v341 = vunpack.c.l.b16 %v302
    %v342 = vunpack.c.l.b16 %v303
    %v343 = vunpack.c.l.b16 %v304
    %v344 = vunpack.c.l.b16 %v305
    %v345 = vunpack.c.l.b16 %v306
    %v346 = vunpack.c.l.b16 %v307
    %v347 = vunpack.c.l.b16 %v308
    %v348 = vunpack.c.l.b16 %v309
    %v349 = vunpack.c.l.b16 %v310
    %v350 = vunpack.c.l.b16 %v311
    %v351 = vunpack.c.l.b16 %v312
    %v352 = vunpack.c.l.b16 %v313
    %v353 = vunpack.c.l.b16 %v314
    %v354 = vunpack.c.l.b16 %v315
    %v355 = vunpack.c.l.b16 %v316
    %v356 = vpack.c.b16 %v341, %v340
    %v357 = vpack.c.b16 %v343, %v342
    %v358 = vpack.c.b16 %v345, %v344
    %v359 = vpack.c.b16 %v347, %v346
    %v360 = vpack.c.b16 %v349, %v348
    %v361 = vpack.c.b16 %v351, %v350
    %v362 = vpack.c.b16 %v353, %v352
    %v363 = vpack.c.b16 %v355, %v354
    %372 = vmatprep.subr.bf16.mxu0 0
    %373 = vmatpush1.bf16.msra.mxu0 %v363
    %374 = vmatprep.subr.bf16.mxu0 0
    %375 = vmatpush1.bf16.msra.mxu0 %v362
    %376 = vmatprep.subr.bf16.mxu0 0
    %377 = vmatpush1.bf16.msra.mxu0 %v361
    %378 = vmatprep.subr.bf16.mxu0 0
    %379 = vmatpush1.bf16.msra.mxu0 %v360
    %380 = vmatprep.subr.bf16.mxu0 0
    %381 = vmatpush1.bf16.msra.mxu0 %v359
    %382 = vmatprep.subr.bf16.mxu0 0
    %383 = vmatpush1.bf16.msra.mxu0 %v358
    %384 = vmatprep.subr.bf16.mxu0 0
    %385 = vmatpush1.bf16.msra.mxu0 %v357
    %386 = vmatprep.subr.bf16.mxu0 0
    %387 = vmatpush1.bf16.msra.mxu0 %v356
    %388 = vmatprep.subr.bf16.mxu0 0
    %389 = vmatpush2.bf16.msra.mxu0 0
    %390 = vmatprep.subr.bf16.mxu0 0
    %391 = vmatpush2.bf16.msra.mxu0 0
    %392 = vmatprep.subr.bf16.mxu0 0
    %393 = vmatpush2.bf16.msra.mxu0 0
    %394 = vmatprep.subr.bf16.mxu0 0
    %395 = vmatpush2.bf16.msra.mxu0 0
    %396 = vmatprep.subr.bf16.mxu0 0
    %397 = vmatpush2.bf16.msra.mxu0 0
    %398 = vmatprep.subr.bf16.mxu0 0
    %399 = vmatpush2.bf16.msra.mxu0 0
    %400 = vmatprep.subr.bf16.mxu0 0
    %401 = vmatpush2.bf16.msra.mxu0 0
    %402 = vmatprep.subr.bf16.mxu0 0
    %403 = vmatpush2.bf16.msra.mxu0 0
    %404 = vmatprep.mubr.bf16.mxu0 0
    %405 = vmatmul.mubr.bf16.gmra.mxu0 %v300
    %v406 = vpop.f32.mrf.mxu0
    %v407 = vadd.f32 %v322, %v406
    %v408 = vpop.f32.mrf.mxu0
    %v409 = vpop.f32.mrf.mxu0
    %v410 = vadd.f32 %v322, %v409
    %v411 = vpop.f32.mrf.mxu0
    %412 = vdwg.mxu0
    %v413 = vxor.u32 %v407, 2147483648
    %v414 = vxor.u32 %v410, 2147483648
    %v415 = vmul.f32 %v413, 1.442695
    %v416 = vpow.pop %v415
    %v417 = vmul.f32 %v414, 1.442695
    %v418 = vpow.pop %v417
    %v419 = vadd.f32 %v416, 1.0
    %v420 = vadd.f32 %v418, 1.0
    %v421 = vrcp.pop %v419
    %v422 = vmul.f32 1.0, %v421
    %v423 = vrcp.pop %v420
    %v424 = vmul.f32 1.0, %v423
    %425 = vst [vmem:[#allocation12] sm:$0xff] %v422
    %426 = vst [vmem:[#allocation12 + $0x8] sm:$0xff] %v424
    %427 = vst [vmem:[#allocation2] sm:$0xff] %v297
    %428 = vst [vmem:[#allocation2 + $0x8] sm:$0xff] %v299
    // Predicated region
    $region54: #{tpu_custom_call.1} parent=1 // pred_check
      %p429 = pneg %p99
    $region55: #{tpu_custom_call.1} parent=1 // pred_check_branch
      %431 = sbr.rel (%p429) target = $region57
    $region56: #{tpu_custom_call.1} parent=1 // pred_region
      %432 = vst [vmem:[#allocation13] sm:$0xff] %v297
      %433 = vst [vmem:[#allocation13 + $0x8] sm:$0xff] %v299
    $region57: #{tpu_custom_call.1} parent=1 // pred_fallthru
      _
    // Predicated region
    $region58: #{tpu_custom_call.1} parent=1 // pred_check
      _
    $region59: #{tpu_custom_call.1} parent=1 // pred_check_branch
      %435 = sbr.rel (0) target = $region61
    $region60: #{tpu_custom_call.1} parent=1 // pred_region
      %s437 = ssub.s32 256, 256
      %438 = vsyncadd [#allocation5], %s437
      %s439 = sshll.u32 [#allocation12], 4
      %s440 = int_to_ptr.vmem [resolvable:$true] %s439
      %445 = dma.vmem_to_hbm [thread:$0]  %s440, 256, %s7, [#allocation5], 128, 128, 8
    $region61: #{tpu_custom_call.1} parent=1 // pred_fallthru
      _
    // Predicated region
    $region62: #{tpu_custom_call.1} parent=1 // pred_check
      _
    $region63: #{tpu_custom_call.1} parent=1 // pred_check_branch
      %447 = sbr.rel (0) target = $region65
    $region64: #{tpu_custom_call.1} parent=1 // pred_region
      %s449 = ssub.s32 256, 256
      %450 = vsyncadd [#allocation14], %s449
      %s451 = sshll.u32 [#allocation13], 4
      %s452 = int_to_ptr.vmem [resolvable:$true] %s451
      %457 = dma.vmem_to_hbm [thread:$0]  %s452, 256, %s8, [#allocation14], 128, 128, 8
    $region65: #{tpu_custom_call.1} parent=1 // pred_fallthru
      _
    // Predicated region
    $region66: #{tpu_custom_call.1} parent=1 // pred_check
      _
    $region67: #{tpu_custom_call.1} parent=1 // pred_check_branch
      %459 = sbr.rel (0) target = $region69
    $region68: #{tpu_custom_call.1} parent=1 // pred_region
      %460 = dma.done [#allocation5], 256
    $region69: #{tpu_custom_call.1} parent=1 // pred_fallthru
      _
    // Predicated region
    $region70: #{tpu_custom_call.1} parent=1 // pred_check
      _
    $region71: #{tpu_custom_call.1} parent=1 // pred_check_branch
      %462 = sbr.rel (0) target = $region73
    $region72: #{tpu_custom_call.1} parent=1 // pred_region
      %463 = dma.done [#allocation14], 256
    $region73: #{tpu_custom_call.1} parent=1 // pred_fallthru
      _
    %464 = vsyncpa [#allocation4], 1
    %465 = vsyncpa [#allocation7], 1
    %466 = vsyncpa [#allocation10], 1
    %467 = vsyncpa [#allocation5], 1
    %468 = vsyncpa [#allocation14], 1

</llo_original>
